<compile_context>
chip_gen: v5e
topology: v5e:2x2
jax: 0.10.0
libtpu: 0.0.40
codegen_flags: <defaults>
</compile_context>

<pallas_src>
import functools

import jax
import jax.numpy as jnp
from jax.experimental import pallas as pl
from jax.experimental.pallas import tpu as pltpu


_NEG = -1e30  # folded padded-class mask (becomes -inf after exp)


def _round_up(x, m):
    return (x + m - 1) // m * m


def pack_luts(luts):
    """(4, C, D) -> k-major (4*D, C).  The OIM LUT changes slowly; cache this
    packed copy to avoid paying the transpose on every forward call."""
    nb, C, D = luts.shape
    assert nb == 4, "expected 4 LUT banks"
    return jnp.transpose(luts, (0, 2, 1)).reshape(nb * D, C)


def _oim4b_lse_kernel(feat_ref, lut_ref, logits_ref, lse_ref, m_sc, l_sc, *,
                      scalar, lut_resident):
    """One (batch-tile i, class-tile j) grid step.

    feat_ref:   (bt, k_pad)        feature tile (4 banks + bias column)
    lut_ref:    (n_ct|1, k_pad, ct) LUT blocks (resident: all; streaming: one)
    logits_ref: (bt, ct)           output logits tile
    lse_ref:    (bt, 1)            per-example logsumexp, written at last j
    m_sc/l_sc:  (bt, 1) f32        running max / running sum-exp
    """
    j = pl.program_id(1)

    @pl.when(j == 0)
    def _init():
        m_sc[...] = jnp.full_like(m_sc, -jnp.inf)
        l_sc[...] = jnp.zeros_like(l_sc)

    # Scale the (bt, K) feature tile rather than the (bt, ct) logits tile.
    feat = feat_ref[...]
    if scalar != 1.0:
        feat = feat * jnp.asarray(scalar, feat.dtype)

    # Resident: the whole LUT lives in VMEM, pick class-block j dynamically.
    # Streaming: the pipeline already delivered block j as the only slab.
    lut = lut_ref[j] if lut_resident else lut_ref[0]

    # Single fused MXU contraction: (bt, k_pad) x (k_pad, ct) -> (bt, ct), f32.
    logits = jax.lax.dot_general(
        feat, lut,
        dimension_numbers=(((1,), (0,)), ((), ())),
        preferred_element_type=jnp.float32,
    )
    logits_ref[...] = logits.astype(logits_ref.dtype)

    # Online logsumexp across the class tiles (padded columns already carry
    # ~-1e30 via the bias fold, so no masking is needed here).
    m_prev = m_sc[...]
    m_new = jnp.maximum(m_prev, jnp.max(logits, axis=-1, keepdims=True))
    alpha = jnp.exp(m_prev - m_new)          # exactly 0 on the first tile
    l_sc[...] = alpha * l_sc[...] + jnp.sum(jnp.exp(logits - m_new),
                                            axis=-1, keepdims=True)
    m_sc[...] = m_new

    @pl.when(j == pl.num_programs(1) - 1)
    def _finalize():
        lse_ref[...] = m_sc[...] + jnp.log(l_sc[...])


def oim4b_loss_forward(features, luts, targets, scalar=1.0, weight=None,
                       size_average=True, *, compute_dtype=None,
                       logits_dtype=jnp.float32, b_tile=128, c_tile=512,
                       lut_resident=None,
                       lut_resident_budget=12 * 1024 * 1024):
    """OIM4bLoss.forward.

    features: (B, 4, D)              four feature banks per example
    luts:     (4, C, D) or (4D, C)   LUTs (pass `pack_luts(luts)` to cache the
                                     k-major packing across calls)
    targets:  (B,) int               class ids
    Returns (loss, logits) with logits = scalar * sum_k features_k @ lut_k.T.
    """
    if weight is not None:
        # TODO(synk): per-class cross_entropy `weight`; the module default is None.
        raise NotImplementedError("per-class weight not implemented")
    assert float(scalar) > 0.0, "scalar must be > 0 (bias-row class masking)"

    B, nb, D = features.shape
    assert nb == 4, "expected 4 feature banks"
    lut_km = pack_luts(luts) if luts.ndim == 3 else luts
    K, C = lut_km.shape
    assert K == 4 * D, "LUT feature dim must match features"

    if compute_dtype is None:
        compute_dtype = features.dtype
    compute_dtype = jnp.dtype(compute_dtype)
    itemsize = compute_dtype.itemsize
    # Sublane granule: 8 rows for 4-byte dtypes, 16 for bf16 (32-bit packing).
    row_align = 8 if itemsize >= 4 else 32 // itemsize

    # --- tile / padding choices -------------------------------------------
    ct = _round_up(min(_round_up(c_tile, 128), _round_up(C, 128)), 128)
    c_pad = _round_up(C, ct)
    n_ct = c_pad // ct                       # every class tile has >=1 valid col

    bt = min(_round_up(b_tile, row_align), _round_up(B, row_align))
    # v7x has 2 TensorCores: give the "parallel" batch axis >= 2 tiles when B
    # is large enough so both cores get work (no effect on v5e/v6e).
    if B >= 2 * row_align and _round_up(B, bt) // bt < 2:
        bt = _round_up((B + 1) // 2, row_align)
    b_pad = _round_up(B, bt)

    # K plus one bias row/column used to fold the padded-class -inf mask.
    k_pad = _round_up(K + 1, row_align)

    # --- operand packing (one-time layout plumbing, no in-kernel masking) ---
    feat_aug = jnp.zeros((b_pad, k_pad), compute_dtype)
    feat_aug = feat_aug.at[:B, :K].set(features.reshape(B, K).astype(compute_dtype))
    feat_aug = feat_aug.at[:B, K].set(jnp.asarray(1.0, compute_dtype))

    lut_aug = jnp.zeros((k_pad, c_pad), compute_dtype)
    lut_aug = lut_aug.at[:K, :C].set(lut_km.astype(compute_dtype))
    if c_pad > C:
        lut_aug = lut_aug.at[K, C:].set(jnp.asarray(_NEG, compute_dtype))
    # Block-major (n_ct, k_pad, ct): contiguous per-tile DMAs when streaming,
    # dynamic leading-axis indexing when VMEM-resident.
    lut_blocks = lut_aug.reshape(k_pad, n_ct, ct).transpose(1, 0, 2)

    lut_bytes = n_ct * k_pad * ct * itemsize
    if lut_resident is None:
        lut_resident = lut_bytes <= lut_resident_budget
    lut_resident = bool(lut_resident)

    if lut_resident:
        # Constant block index -> the whole LUT is DMA'd once and stays in
        # VMEM; LUT HBM traffic becomes independent of B.
        lut_spec = pl.BlockSpec((n_ct, k_pad, ct), lambda i, j: (0, 0, 0))
    else:
        lut_spec = pl.BlockSpec((1, k_pad, ct), lambda i, j: (j, 0, 0))

    # VMEM budget (x2 for double buffering), capped so it stays safe on v7x.
    out_itemsize = jnp.dtype(logits_dtype).itemsize
    vmem_needed = (2 * bt * k_pad * itemsize
                   + 2 * (lut_bytes if lut_resident else k_pad * ct * itemsize)
                   + 2 * bt * ct * out_itemsize
                   + 4 * bt * 4)
    vmem_limit = int(min(48 << 20, max(32 << 20, 2 * vmem_needed)))

    # NOTE: scalar is baked in as a Python float -> one compile per distinct
    # scalar value (fine: it is a fixed module hyper-parameter).
    kernel = functools.partial(_oim4b_lse_kernel, scalar=float(scalar),
                               lut_resident=lut_resident)

    grid = (b_pad // bt, n_ct)
    logits_pad, lse_pad = pl.pallas_call(
        kernel,
        out_shape=(
            jax.ShapeDtypeStruct((b_pad, c_pad), logits_dtype),
            jax.ShapeDtypeStruct((b_pad, 1), jnp.float32),
        ),
        grid_spec=pltpu.PrefetchScalarGridSpec(
            num_scalar_prefetch=0,
            grid=grid,
            in_specs=[
                pl.BlockSpec((bt, k_pad), lambda i, j: (i, 0)),
                lut_spec,
            ],
            out_specs=(
                pl.BlockSpec((bt, ct), lambda i, j: (i, j)),
                pl.BlockSpec((bt, 1), lambda i, j: (i, 0)),
            ),
            scratch_shapes=[pltpu.VMEM((bt, 1), jnp.float32)] * 2,
        ),
        compiler_params=pltpu.CompilerParams(
            dimension_semantics=("parallel", "arbitrary"),
            vmem_limit_bytes=vmem_limit,
        ),
    )(feat_aug, lut_blocks)

    logits = logits_pad[:B, :C]
    lse = lse_pad[:B, 0]
    # Target pick moved out of the hot loop: trivial gather on the (B, C) output.
    picked = jnp.take_along_axis(logits.astype(jnp.float32),
                                 targets.astype(jnp.int32)[:, None], axis=-1)[:, 0]
    nll = lse - picked
    loss = jnp.mean(nll) if size_average else jnp.sum(nll)
    return loss, logits


def _reference(features, luts, targets, scalar=1.0):
    logits = scalar * jnp.einsum("bkd,kcd->bc", features.astype(jnp.float32),
                                 luts.astype(jnp.float32))
    lse = jax.nn.logsumexp(logits, axis=-1)
    picked = jnp.take_along_axis(logits, targets[:, None], axis=-1)[:, 0]
    return jnp.mean(lse - picked), logits


if __name__ == "__main__":
    key = jax.random.PRNGKey(0)

    def _make_case(case_key, B, D, C):
        kf, kl, kt = jax.random.split(case_key, 3)
        features = jax.random.normal(kf, (B, 4, D), dtype=jnp.float32)
        # Emulate the post-init_lut state: row-normalized LUT vectors.
        luts = jax.random.normal(kl, (4, C, D), dtype=jnp.float32)
        luts = luts / jnp.linalg.norm(luts, axis=-1, keepdims=True)
        targets = jax.random.randint(kt, (B,), 0, C, dtype=jnp.int32)
        return features, luts, targets

    k1, k2, k3 = jax.random.split(key, 3)

    # Case 1: module-default small shapes (batch=8, num_features=32,
    # num_classes=16), f32, resident LUT, single lane-padded class tile.
    f, l, t = _make_case(k1, B=8, D=32, C=16)
    loss, logits = oim4b_loss_forward(f, l, t, scalar=1.0)
    jax.block_until_ready((loss, logits))
    rloss, rlogits = _reference(f, l, t, scalar=1.0)
    assert logits.shape == (8, 16)
    assert jnp.allclose(logits, rlogits, atol=1e-4, rtol=1e-4), "logits mismatch"
    assert jnp.allclose(loss, rloss, atol=1e-4, rtol=1e-4), "loss mismatch"

    # Case 2: multi-tile class axis, padded batch & classes, streaming LUT
    # path, scalar != 1 (exercises online LSE + bias-fold masking), f32.
    f, l, t = _make_case(k2, B=12, D=64, C=300)
    loss, logits = oim4b_loss_forward(f, l, t, scalar=10.0, c_tile=128,
                                      lut_resident=False)
    jax.block_until_ready((loss, logits))
    rloss, rlogits = _reference(f, l, t, scalar=10.0)
    assert logits.shape == (12, 300)
    assert jnp.allclose(logits, rlogits, atol=1e-3, rtol=1e-4), "logits mismatch"
    assert jnp.allclose(loss, rloss, atol=1e-3, rtol=1e-4), "loss mismatch"

    # Case 3: bf16 operands (v6e/v7x fast path, 16-sublane alignment),
    # resident LUT, padded classes.
    f, l, t = _make_case(k3, B=16, D=64, C=300)
    loss, logits = oim4b_loss_forward(f, l, t, scalar=1.0, c_tile=256,
                                      compute_dtype=jnp.bfloat16)
    jax.block_until_ready((loss, logits))
    rloss, rlogits = _reference(f, l, t, scalar=1.0)
    assert logits.shape == (16, 300)
    assert jnp.allclose(logits, rlogits, atol=0.1, rtol=0.05), "bf16 logits mismatch"
    assert jnp.allclose(loss, rloss, atol=0.05, rtol=0.05), "bf16 loss mismatch"

    print("KERNEL_OK")
</pallas_src>

<mosaic_0001>
module attributes {stable_mosaic.version = 11 : i64} {
  func.func @_oim4b_lse_kernel(%arg0: i32, %arg1: i32, %arg2: memref<8x136xf32, #tpu.memory_space<vmem>>, %arg3: memref<1x136x128xf32, #tpu.memory_space<vmem>>, %arg4: memref<8x128xf32, #tpu.memory_space<vmem>>, %arg5: memref<8x1xf32, #tpu.memory_space<vmem>>, %arg6: memref<8x1xf32, #tpu.memory_space<vmem>>, %arg7: memref<8x1xf32, #tpu.memory_space<vmem>>) attributes {dimension_semantics = [#tpu.dimension_semantics<parallel>, #tpu.dimension_semantics<arbitrary>], iteration_bounds = array<i64: 1, 1>, scalar_prefetch = 0 : i64, scratch_operands = 2 : i64, tpu.core_type = #tpu.core_type<tc>, window_params = [{transform_indices = @transform_0, window_bounds = array<i64: 8, 136>}, {pipeline_mode = #tpu.pipeline_mode<synchronous>, transform_indices = @transform_1, window_bounds = array<i64: 1, 136, 128>}, {transform_indices = @transform_2, window_bounds = array<i64: 8, 128>}, {transform_indices = @transform_3, window_bounds = array<i64: 8, 1>}]} {
    %c0_i32 = arith.constant 0 : i32
    %0 = arith.cmpi eq, %arg1, %c0_i32 : i32
    %1 = arith.extui %0 : i1 to i32
    %c0_i32_0 = arith.constant 0 : i32
    %2 = arith.cmpi ne, %1, %c0_i32_0 : i32
    scf.if %2 {
      %cst_18 = arith.constant 0xFF800000 : f32
      %28 = vector.broadcast %cst_18 : f32 to vector<8x1xf32>
      %c0_19 = arith.constant 0 : index
      %c0_20 = arith.constant 0 : index
      %29 = vector.load %arg6[%c0_19, %c0_20] : memref<8x1xf32, #tpu.memory_space<vmem>>, vector<8x1xf32>
      tpu.vector_store %arg6[%c0_19, %c0_20], %28 {strides = array<i32>} : memref<8x1xf32, #tpu.memory_space<vmem>>, vector<8x1xf32>,
      %cst_21 = arith.constant 0.000000e+00 : f32
      %30 = vector.broadcast %cst_21 : f32 to vector<8x1xf32>
      %c0_22 = arith.constant 0 : index
      %c0_23 = arith.constant 0 : index
      %31 = vector.load %arg7[%c0_22, %c0_23] : memref<8x1xf32, #tpu.memory_space<vmem>>, vector<8x1xf32>
      tpu.vector_store %arg7[%c0_22, %c0_23], %30 {strides = array<i32>} : memref<8x1xf32, #tpu.memory_space<vmem>>, vector<8x1xf32>,
    } else {
    }
    %c0 = arith.constant 0 : index
    %c0_1 = arith.constant 0 : index
    %3 = vector.load %arg2[%c0, %c0_1] : memref<8x136xf32, #tpu.memory_space<vmem>>, vector<8x136xf32>
    %4 = arith.index_cast %arg1 : i32 to index
    %c0_2 = arith.constant 0 : index
    %c0_3 = arith.constant 0 : index
    %5 = vector.load %arg3[%4, %c0_2, %c0_3] : memref<1x136x128xf32, #tpu.memory_space<vmem>>, vector<1x136x128xf32>
    %6 = vector.shape_cast %5 : vector<1x136x128xf32> to vector<136x128xf32>
    %cst = arith.constant dense<0.000000e+00> : vector<8x128xf32>
    %7 = tpu.matmul %3, %6, %cst {dimension_numbers = #tpu.dot_dimension_numbers<[1], [0], [0], [1], [0, 0, 1, 1], [], []>} : vector<8x136xf32>, vector<136x128xf32>, vector<8x128xf32> -> vector<8x128xf32>
    %c0_4 = arith.constant 0 : index
    %c0_5 = arith.constant 0 : index
    %8 = vector.load %arg4[%c0_4, %c0_5] : memref<8x128xf32, #tpu.memory_space<vmem>>, vector<8x128xf32>
    tpu.vector_store %arg4[%c0_4, %c0_5], %7 {strides = array<i32>} : memref<8x128xf32, #tpu.memory_space<vmem>>, vector<8x128xf32>,
    %c0_6 = arith.constant 0 : index
    %c0_7 = arith.constant 0 : index
    %9 = vector.load %arg6[%c0_6, %c0_7] : memref<8x1xf32, #tpu.memory_space<vmem>>, vector<8x1xf32>
    %cst_8 = arith.constant dense<0xFF800000> : vector<8xf32>
    %10 = vector.multi_reduction <maximumf>, %7, %cst_8 [1] : vector<8x128xf32> to vector<8xf32>
    %11 = vector.shape_cast %10 : vector<8xf32> to vector<8x1xf32>
    %12 = arith.maximumf %9, %11 : vector<8x1xf32>
    %13 = arith.subf %9, %12 : vector<8x1xf32>
    %14 = math.exp %13 : vector<8x1xf32>
    %c0_9 = arith.constant 0 : index
    %c0_10 = arith.constant 0 : index
    %15 = vector.load %arg7[%c0_9, %c0_10] : memref<8x1xf32, #tpu.memory_space<vmem>>, vector<8x1xf32>
    %16 = arith.mulf %14, %15 : vector<8x1xf32>
    %17 = vector.broadcast %12 : vector<8x1xf32> to vector<8x128xf32>
    %18 = arith.subf %7, %17 : vector<8x128xf32>
    %19 = math.exp %18 : vector<8x128xf32>
    %cst_11 = arith.constant dense<0.000000e+00> : vector<8xf32>
    %20 = vector.multi_reduction <add>, %19, %cst_11 [1] : vector<8x128xf32> to vector<8xf32>
    %21 = vector.shape_cast %20 : vector<8xf32> to vector<8x1xf32>
    %22 = arith.addf %16, %21 : vector<8x1xf32>
    %c0_12 = arith.constant 0 : index
    %c0_13 = arith.constant 0 : index
    %23 = vector.load %arg7[%c0_12, %c0_13] : memref<8x1xf32, #tpu.memory_space<vmem>>, vector<8x1xf32>
    tpu.vector_store %arg7[%c0_12, %c0_13], %22 {strides = array<i32>} : memref<8x1xf32, #tpu.memory_space<vmem>>, vector<8x1xf32>,
    %c0_14 = arith.constant 0 : index
    %c0_15 = arith.constant 0 : index
    %24 = vector.load %arg6[%c0_14, %c0_15] : memref<8x1xf32, #tpu.memory_space<vmem>>, vector<8x1xf32>
    tpu.vector_store %arg6[%c0_14, %c0_15], %12 {strides = array<i32>} : memref<8x1xf32, #tpu.memory_space<vmem>>, vector<8x1xf32>,
    %c0_i32_16 = arith.constant 0 : i32
    %25 = arith.cmpi eq, %arg1, %c0_i32_16 : i32
    %26 = arith.extui %25 : i1 to i32
    %c0_i32_17 = arith.constant 0 : i32
    %27 = arith.cmpi ne, %26, %c0_i32_17 : i32
    scf.if %27 {
      %c0_18 = arith.constant 0 : index
      %c0_19 = arith.constant 0 : index
      %28 = vector.load %arg6[%c0_18, %c0_19] : memref<8x1xf32, #tpu.memory_space<vmem>>, vector<8x1xf32>
      %c0_20 = arith.constant 0 : index
      %c0_21 = arith.constant 0 : index
      %29 = vector.load %arg7[%c0_20, %c0_21] : memref<8x1xf32, #tpu.memory_space<vmem>>, vector<8x1xf32>
      %30 = math.log %29 : vector<8x1xf32>
      %31 = arith.addf %28, %30 : vector<8x1xf32>
      %c0_22 = arith.constant 0 : index
      %c0_23 = arith.constant 0 : index
      %32 = vector.load %arg5[%c0_22, %c0_23] : memref<8x1xf32, #tpu.memory_space<vmem>>, vector<8x1xf32>
      tpu.vector_store %arg5[%c0_22, %c0_23], %31 {strides = array<i32>} : memref<8x1xf32, #tpu.memory_space<vmem>>, vector<8x1xf32>,
    } else {
    }
    return
  }
  func.func @transform_0(%arg0: i32, %arg1: i32) -> (i32, i32) {
    %c0_i32 = arith.constant 0 : i32
    %c0_i32_0 = arith.constant 0 : i32
    return %arg0, %c0_i32 : i32, i32
  }
  func.func @transform_1(%arg0: i32, %arg1: i32) -> (i32, i32, i32) {
    %c0_i32 = arith.constant 0 : i32
    %c0_i32_0 = arith.constant 0 : i32
    %c0_i32_1 = arith.constant 0 : i32
    %c0_i32_2 = arith.constant 0 : i32
    return %c0_i32, %c0_i32_0, %c0_i32_1 : i32, i32, i32
  }
  func.func @transform_2(%arg0: i32, %arg1: i32) -> (i32, i32) {
    %c0_i32 = arith.constant 0 : i32
    return %arg0, %arg1 : i32, i32
  }
  func.func @transform_3(%arg0: i32, %arg1: i32) -> (i32, i32) {
    %c0_i32 = arith.constant 0 : i32
    %c0_i32_0 = arith.constant 0 : i32
    return %arg0, %c0_i32 : i32, i32
  }
}

</mosaic_0001>

<llo_original>
// kernel: tpu_custom_call.1
$region0: #{tpu_custom_call.1}
  #allocation0 [shape = 'u32[]', space=smem, size = 0x4, offset = 0x4, fixed_abs, tag = 'smem constant byte address 0x4 - core index']
  #allocation1 [shape = 'u32[72,128]{1,0:T(1,128)}', space=vmem, size = 0x9000, scoped, tag = 'internal scratch']
  #allocation2 [shape = 'f32[8,1]{1,0:T(8,128)}', space=vmem, size = 0x1000, scoped, tag = 'scratch operand']
  #allocation3 [shape = 'f32[8,1]{1,0:T(8,128)}', space=vmem, size = 0x1000, scoped, tag = 'scratch operand']
  %s0 = inlined_call_operand.hbm [shape: f32[8,136], index: 0, kind: input, shape index: {}]
  %s1 = inlined_call_operand.hbm [shape: f32[1,136,128], index: 1, kind: input, shape index: {}]
  %s2 = inlined_call_operand.hbm [shape: f32[8,128], index: 2, kind: output, shape index: {0}]
  %s3 = inlined_call_operand.vmem [shape: f32[8,1], index: 3, kind: output, shape index: {1}]
  %4 = xla_tuple %s2, %s3
  %s5 = sld [smem:[#allocation0]]
  $region42: #{tpu_custom_call.1} parent=0
    _
  %s7 = ssub.s32 1, %s5
  %s8 = scalar_select 0, %s7, %s5
  $region1: #{tpu_custom_call.1} parent=0
    #allocation4 [shape = 'u8[8192]{0}', space=vmem, size = 0x2000, scoped, tag = 'input window, operand 0, single buffered']
    #allocation5 [shape = 's32[1]{0}', space=sflag, size = 0x4, scoped, tag = 'scoped memory for tpu_custom_call.1']
    #allocation6 [shape = 's32[1]{0}', space=sflag, size = 0x4, scoped, tag = 'scoped memory for tpu_custom_call.1']
    #allocation7 [shape = 'u8[69632]{0}', space=vmem, size = 0x11000, scoped, tag = 'input window, operand 1, single buffered']
    #allocation8 [shape = 's32[1]{0}', space=sflag, size = 0x4, scoped, tag = 'scoped memory for tpu_custom_call.1']
    #allocation9 [shape = 'u8[4096]{0}', space=vmem, size = 0x1000, scoped, tag = 'output window, operand 0, single buffered']
    %9 = vsyncpa [#allocation5], 0
    %10 = vsyncpa [#allocation8], 0
    %11 = vsyncpa [#allocation6], 0
    // Predicated region
    $region2: #{tpu_custom_call.1} parent=1 // pred_check
      _
    $region3: #{tpu_custom_call.1} parent=1 // pred_check_branch
      %13 = sbr.rel (0) target = $region5
    $region4: #{tpu_custom_call.1} parent=1 // pred_region
      %15 = vsyncadd [#allocation5], 0
      %s17 = sshll.u32 %s0, 4
      %s18 = int_to_ptr.hbm [resolvable:$true] %s17
      %s19 = sshll.u32 [#allocation4], 4
      %s20 = int_to_ptr.vmem [resolvable:$true] %s19
      %22 = dma.hbm_to_vmem [thread:$0]  %s18, 256, %s20, [#allocation5]
    $region5: #{tpu_custom_call.1} parent=1 // pred_fallthru
      _
    // Predicated region
    $region6: #{tpu_custom_call.1} parent=1 // pred_check
      _
    $region7: #{tpu_custom_call.1} parent=1 // pred_check_branch
      %24 = sbr.rel (0) target = $region9
    $region8: #{tpu_custom_call.1} parent=1 // pred_region
      %26 = vsyncadd [#allocation8], 0
      %s27 = sshll.u32 %s1, 4
      %s28 = int_to_ptr.hbm [resolvable:$true] %s27
      %s29 = sshll.u32 [#allocation7], 4
      %s30 = int_to_ptr.vmem [resolvable:$true] %s29
      %35 = dma.hbm_to_vmem [thread:$0]  %s28, 2176, %s30, [#allocation8], 128, 128, 8
    $region9: #{tpu_custom_call.1} parent=1 // pred_fallthru
      _
    // Predicated region
    $region10: #{tpu_custom_call.1} parent=1 // pred_check
      _
    $region11: #{tpu_custom_call.1} parent=1 // pred_check_branch
      %37 = sbr.rel (0) target = $region13
    $region12: #{tpu_custom_call.1} parent=1 // pred_region
      %39 = dma.done [#allocation5], 256
    $region13: #{tpu_custom_call.1} parent=1 // pred_fallthru
      _
    // Predicated region
    $region14: #{tpu_custom_call.1} parent=1 // pred_check
      _
    $region15: #{tpu_custom_call.1} parent=1 // pred_check_branch
      %41 = sbr.rel (0) target = $region17
    $region16: #{tpu_custom_call.1} parent=1 // pred_region
      %43 = dma.done [#allocation8], 2176
    $region17: #{tpu_custom_call.1} parent=1 // pred_fallthru
      _
    %p44 = scmp.eq.s32.totalorder 0, 0
    // Predicated region
    $region18: #{tpu_custom_call.1} parent=1 // pred_check
      %p45 = pneg %p44
    $region19: #{tpu_custom_call.1} parent=1 // pred_check_branch
      %47 = sbr.rel (%p45) target = $region21
    $region20: #{tpu_custom_call.1} parent=1 // pred_region
      %vm48 = vcmask 7168
      %49 = vst.msk [vmem:[#allocation2] sm:$0xff] %vm48, -inf
      %50 = vst.msk [vmem:[#allocation3] sm:$0xff] %vm48, 0.0
    $region21: #{tpu_custom_call.1} parent=1 // pred_fallthru
      _
    %v51 = vld [vmem:[#allocation4] sm:$0xff]
    %v52 = vld [vmem:[#allocation4 + $0x8] sm:$0xff]
    %s53 = smul.u32 0, 136
    %s54 = scalar_lea.vmem [#allocation7], %s53
    %v55 = vld [vmem:[%s54] sm:$0xff]
    %v56 = vld [vmem:[%s54 + $0x8] sm:$0xff]
    %v57 = vld [vmem:[%s54 + $0x10] sm:$0xff]
    %v58 = vld [vmem:[%s54 + $0x18] sm:$0xff]
    %v59 = vld [vmem:[%s54 + $0x20] sm:$0xff]
    %v60 = vld [vmem:[%s54 + $0x28] sm:$0xff]
    %v61 = vld [vmem:[%s54 + $0x30] sm:$0xff]
    %v62 = vld [vmem:[%s54 + $0x38] sm:$0xff]
    %v63 = vld [vmem:[%s54 + $0x40] sm:$0xff]
    %v64 = vld [vmem:[%s54 + $0x48] sm:$0xff]
    %v65 = vld [vmem:[%s54 + $0x50] sm:$0xff]
    %v66 = vld [vmem:[%s54 + $0x58] sm:$0xff]
    %v67 = vld [vmem:[%s54 + $0x60] sm:$0xff]
    %v68 = vld [vmem:[%s54 + $0x68] sm:$0xff]
    %v69 = vld [vmem:[%s54 + $0x70] sm:$0xff]
    %v70 = vld [vmem:[%s54 + $0x78] sm:$0xff]
    %v71 = vld [vmem:[%s54 + $0x80] sm:$0xff]
    %vm72 = vcmask 64512
    %v74 = vsel %vm72, %v52, 0
    %76 = vmatpush.msra.mxu0 %v70
    %77 = vmatpush.msra.mxu0 %v69
    %78 = vmatpush.msra.mxu0 %v68
    %79 = vmatpush.msra.mxu0 %v67
    %80 = vmatpush.msra.mxu0 %v66
    %81 = vmatpush.msra.mxu0 %v65
    %82 = vmatpush.msra.mxu0 %v64
    %83 = vmatpush.msra.mxu0 %v63
    %84 = vmatpush.msra.mxu0 %v62
    %85 = vmatpush.msra.mxu0 %v61
    %86 = vmatpush.msra.mxu0 %v60
    %87 = vmatpush.msra.mxu0 %v59
    %88 = vmatpush.msra.mxu0 %v58
    %89 = vmatpush.msra.mxu0 %v57
    %90 = vmatpush.msra.mxu0 %v56
    %91 = vmatpush.msra.mxu0 %v55
    %92 = vmatmul.f32.gmra.mxu0 %v51
    %v93 = vpop.f32.mrf.mxu0
    %v94 = vadd.f32 0.0, %v93
    %95 = vdwg.mxu0
    %96 = vmatpush.msra.mxu0 0.0
    %97 = vmatpush.msra.mxu0 0.0
    %98 = vmatpush.msra.mxu0 0.0
    %99 = vmatpush.msra.mxu0 0.0
    %100 = vmatpush.msra.mxu0 0.0
    %101 = vmatpush.msra.mxu0 0.0
    %102 = vmatpush.msra.mxu0 0.0
    %103 = vmatpush.msra.mxu0 0.0
    %104 = vmatpush.msra.mxu0 0.0
    %105 = vmatpush.msra.mxu0 0.0
    %106 = vmatpush.msra.mxu0 0.0
    %107 = vmatpush.msra.mxu0 0.0
    %108 = vmatpush.msra.mxu0 0.0
    %109 = vmatpush.msra.mxu0 0.0
    %110 = vmatpush.msra.mxu0 0.0
    %111 = vmatpush.msra.mxu0 %v71
    %112 = vmatmul.f32.gmra.mxu0 %v74
    %v113 = vpop.f32.mrf.mxu0
    %v114 = vadd.f32 %v94, %v113
    %115 = vdwg.mxu0
    %116 = vst [vmem:[#allocation9] sm:$0xff] %v114
    %v117 = vld [vmem:[#allocation2] sm:$0xff]
    %118 = vmax.xlane.f32.xlu0 %v114
    %v119 = vpop.xlane.xlu0 %118
    %v120 = vmax.f32 %v117, %v119
    %v121 = vsub.f32 %v117, %v120
    %v122 = vmul.f32 %v121, 1.442695
    %v123 = vpow.pop %v122
    %v124 = vld [vmem:[#allocation3] sm:$0xff]
    %v125 = vmul.f32 %v123, %v124
    %127 = vset.pattern.permute.xlu0 0
    %128 = vperm.xlu0 %127, %v120
    %v129 = vpop.permute.xlu0 %128
    %v131 = vsub.f32 %v114, %v129
    %v132 = vmul.f32 %v131, 1.442695
    %v133 = vpow.pop %v132
    %134 = vadd.xlane.f32.xlu0 %v133
    %v135 = vpop.xlane.xlu0 %134
    %v136 = vadd.f32 %v125, %v135
    %vm137 = vcmask 7168
    %138 = vst.msk [vmem:[#allocation3] sm:$0xff] %vm137, %v136
    %139 = vst.msk [vmem:[#allocation2] sm:$0xff] %vm137, %v120
    // Predicated region
    $region22: #{tpu_custom_call.1} parent=1 // pred_check
      %p140 = pneg %p44
    $region23: #{tpu_custom_call.1} parent=1 // pred_check_branch
      %142 = sbr.rel (%p140) target = $region25
    $region24: #{tpu_custom_call.1} parent=1 // pred_region
      %v143 = vld [vmem:[#allocation2] sm:$0xff]
      %v144 = vld [vmem:[#allocation3] sm:$0xff]
      %v145 = vlog2.pop %v144
      %v146 = vmul.f32 %v145, 0.6931472
      %v147 = vadd.f32 %v143, %v146
      %148 = vst.msk [vmem:[%s3] sm:$0xff] %vm137, %v147
    $region25: #{tpu_custom_call.1} parent=1 // pred_fallthru
      _
    // Predicated region
    $region26: #{tpu_custom_call.1} parent=1 // pred_check
      _
    $region27: #{tpu_custom_call.1} parent=1 // pred_check_branch
      %150 = sbr.rel (0) target = $region29
    $region28: #{tpu_custom_call.1} parent=1 // pred_region
      %152 = vsyncadd [#allocation6], 0
      %s154 = sshll.u32 [#allocation9], 4
      %s155 = int_to_ptr.vmem [resolvable:$true] %s154
      %s156 = sshll.u32 %s2, 4
      %s157 = int_to_ptr.hbm [resolvable:$true] %s156
      %159 = dma.vmem_to_hbm [thread:$0]  %s155, 128, %s157, [#allocation6]
    $region29: #{tpu_custom_call.1} parent=1 // pred_fallthru
      _
    // Predicated region
    $region30: #{tpu_custom_call.1} parent=1 // pred_check
      _
    $region31: #{tpu_custom_call.1} parent=1 // pred_check_branch
      %161 = sbr.rel (0) target = $region33
    $region32: #{tpu_custom_call.1} parent=1 // pred_region
      _
    $region33: #{tpu_custom_call.1} parent=1 // pred_fallthru
      _
    // Predicated region
    $region34: #{tpu_custom_call.1} parent=1 // pred_check
      _
    $region35: #{tpu_custom_call.1} parent=1 // pred_check_branch
      %163 = sbr.rel (0) target = $region37
    $region36: #{tpu_custom_call.1} parent=1 // pred_region
      %165 = dma.done [#allocation6], 128
    $region37: #{tpu_custom_call.1} parent=1 // pred_fallthru
      _
    // Predicated region
    $region38: #{tpu_custom_call.1} parent=1 // pred_check
      _
    $region39: #{tpu_custom_call.1} parent=1 // pred_check_branch
      %167 = sbr.rel (0) target = $region41
    $region40: #{tpu_custom_call.1} parent=1 // pred_region
      _
    $region41: #{tpu_custom_call.1} parent=1 // pred_fallthru
      _
    %168 = vsyncpa [#allocation5], 1
    %169 = vsyncpa [#allocation8], 1
    %170 = vsyncpa [#allocation6], 1

</llo_original>
